<compile_context>
chip_gen: v7x
topology: tpu7x:2x2x1
jax: 0.10.0
libtpu: 0.0.40
codegen_flags: <defaults>
</compile_context>

<pallas_src>
import functools

import jax
import jax.numpy as jnp
from jax.experimental import pallas as pl
from jax.experimental.pallas import tpu as pltpu

SIGMA = 0.1
IS_RELATIVE_DETACH = True  # autograd-only flag in PyTorch; no forward effect

_LANES = 128
_SUBLANES = 8
_MAX_TILE_ROWS = 1024      # 1024 x 128 x 4B = 512 KiB per f32 buffer

_SQRT2 = 1.4142135623730951


def _hash_u32(h):
    """Cheap avalanche hash (murmur/lowbias32-style finalizer) on uint32."""
    h = (h ^ (h >> 16)) * jnp.uint32(0x7FEB352D)
    h = (h ^ (h >> 15)) * jnp.uint32(0x846CA68B)
    h = h ^ (h >> 16)
    return h


def _std_normal_from_u32(bits):
    """Map uint32 random bits -> approx N(0,1) float32, elementwise.

    Uses z = sqrt(2) * erfinv(2u - 1) with Giles' (2012) single-precision
    erfinv polynomial; only needs mul/add/where/log/sqrt (all Mosaic-safe).
    """
    # 24-bit uniform strictly inside (0, 1)
    b24 = (bits >> 8).astype(jnp.int32).astype(jnp.float32)
    u = (b24 + 0.5) * jnp.float32(1.0 / 16777216.0)
    t = 2.0 * u - 1.0                       # in (-1, 1), |t| <= 1 - 2^-24
    w = -jnp.log(1.0 - t * t)               # in [0, ~16.6]

    # central branch (w < 5)
    ws = w - 2.5
    ps = jnp.float32(2.81022636e-08)
    for c in (3.43273939e-07, -3.5233877e-06, -4.39150654e-06, 0.00021858087,
              -0.00125372503, -0.00417768164, 0.246640727, 1.50140941):
        ps = jnp.float32(c) + ps * ws

    # tail branch (w >= 5)
    wb = jnp.sqrt(w) - 3.0
    pb = jnp.float32(-0.000200214257)
    for c in (0.000100950558, 0.00134934322, -0.00367342844, 0.00573950773,
              -0.0076224613, 0.00943887047, 1.00167406, 2.83297682):
        pb = jnp.float32(c) + pb * wb

    p = jnp.where(w < 5.0, ps, pb)
    return jnp.float32(_SQRT2) * p * t


def gaussian_noise_kernel(seed_ref, x_ref, o_ref, *, sigma, tile_rows):
    rows, lanes = x_ref.shape
    i = pl.program_id(0)

    # Global element index of each lane of this tile = RNG counter.
    row = jax.lax.broadcasted_iota(jnp.int32, (rows, lanes), 0)
    col = jax.lax.broadcasted_iota(jnp.int32, (rows, lanes), 1)
    ctr = (i * tile_rows + row) * lanes + col

    # Mix in the seed (int32 wrap-around, then reinterpret as uint32).
    keyed = (ctr + seed_ref[0] * jnp.int32(-1640531527)).astype(jnp.uint32)
    z = _std_normal_from_u32(_hash_u32(keyed))

    xv = x_ref[...].astype(jnp.float32)
    # .detach() in PyTorch only changes gradients, not forward values.
    out = xv + (jnp.float32(sigma) * xv) * z
    o_ref[...] = out.astype(o_ref.dtype)


def gaussian_noise(x, seed, *, sigma=SIGMA, training=True):
    """Pallas implementation of GaussianNoise.forward.

    x: any-shaped float array (NCHW in the original module).
    seed: int32 scalar; caller should vary it per step to mimic torch RNG.
    """
    if (not training) or sigma == 0:
        return x

    orig_shape = x.shape
    total = x.size

    if total % (_LANES * _SUBLANES) == 0:
        # Fast path: free metadata reshape, no pad / slice copies.
        rows = total // _LANES
        x2d = x.reshape(rows, _LANES)
        pad = 0
    else:
        rows = _SUBLANES * pl.cdiv(total, _LANES * _SUBLANES)
        pad = rows * _LANES - total
        x2d = jnp.pad(x.reshape(-1), (0, pad)).reshape(rows, _LANES)

    tile_rows = min(_MAX_TILE_ROWS, rows)   # multiple of 8 in both paths
    grid = (pl.cdiv(rows, tile_rows),)
    seed_arr = jnp.asarray([seed], dtype=jnp.int32)

    out2d = pl.pallas_call(
        functools.partial(gaussian_noise_kernel, sigma=float(sigma),
                          tile_rows=tile_rows),
        out_shape=jax.ShapeDtypeStruct((rows, _LANES), x.dtype),
        grid_spec=pltpu.PrefetchScalarGridSpec(
            num_scalar_prefetch=1,
            grid=grid,
            in_specs=[pl.BlockSpec((tile_rows, _LANES),
                                   lambda i, seed: (i, 0))],
            out_specs=pl.BlockSpec((tile_rows, _LANES),
                                   lambda i, seed: (i, 0)),
        ),
        compiler_params=pltpu.CompilerParams(
            dimension_semantics=("parallel",)),
    )(seed_arr, x2d)

    if pad:
        out = out2d.reshape(-1)[:total].reshape(orig_shape)
    else:
        out = out2d.reshape(orig_shape)
    return out


if __name__ == "__main__":
    key = jax.random.PRNGKey(0)
    # NCHW input, small shapes: batch=2, channels=4, spatial=16x16
    x = jax.random.normal(key, (2, 4, 16, 16), dtype=jnp.float32)

    # training-mode forward (adds multiplicative Gaussian noise)
    y = gaussian_noise(x, seed=0, sigma=SIGMA, training=True)
    y = jax.block_until_ready(y)

    # sanity checks: shape/dtype preserved, values finite, perturbation is
    # bounded relative to sigma*|x|, and noise is actually non-trivial.
    assert y.shape == x.shape and y.dtype == x.dtype
    assert bool(jnp.all(jnp.isfinite(y)))
    rel = jnp.abs(y - x) / (SIGMA * jnp.abs(x) + 1e-12)
    assert float(jnp.max(rel)) < 10.0        # |N(0,1)| samples stay well < 10
    assert float(jnp.max(jnp.abs(y - x))) > 0.0

    # eval-mode forward is identity
    y_eval = gaussian_noise(x, seed=0, sigma=SIGMA, training=False)
    assert bool(jnp.all(y_eval == x))

    print("KERNEL_OK")
</pallas_src>

<mosaic_0001>
module attributes {stable_mosaic.version = 11 : i64} {
  func.func @gaussian_noise_kernel(%arg0: i32, %arg1: memref<1xi32, #tpu.memory_space<smem>>, %arg2: memref<16x128xf32, #tpu.memory_space<vmem>>, %arg3: memref<16x128xf32, #tpu.memory_space<vmem>>) attributes {dimension_semantics = [#tpu.dimension_semantics<parallel>], iteration_bounds = array<i64: 1>, scalar_prefetch = 1 : i64, scratch_operands = 0 : i64, tpu.core_type = #tpu.core_type<tc>, window_params = [{transform_indices = @transform_0, window_bounds = array<i64: 16, 128>}, {transform_indices = @transform_1, window_bounds = array<i64: 16, 128>}]} {
    %0 = tpu.iota {dimensions = array<i32: 0>} : vector<16x128xi32>
    %1 = tpu.iota {dimensions = array<i32: 1>} : vector<16x128xi32>
    %c16_i32 = arith.constant 16 : i32
    %2 = arith.muli %arg0, %c16_i32 : i32
    %3 = vector.broadcast %2 : i32 to vector<16x128xi32>
    %4 = arith.addi %3, %0 : vector<16x128xi32>
    %c128_i32 = arith.constant 128 : i32
    %5 = vector.broadcast %c128_i32 : i32 to vector<16x128xi32>
    %6 = arith.muli %4, %5 : vector<16x128xi32>
    %7 = arith.addi %6, %1 : vector<16x128xi32>
    %c0 = arith.constant 0 : index
    %8 = memref.load %arg1[%c0] : memref<1xi32, #tpu.memory_space<smem>>
    %c-1640531527_i32 = arith.constant -1640531527 : i32
    %9 = arith.muli %8, %c-1640531527_i32 : i32
    %10 = vector.broadcast %9 : i32 to vector<16x128xi32>
    %11 = arith.addi %7, %10 : vector<16x128xi32>
    %c16_i32_0 = arith.constant 16 : i32
    %12 = vector.broadcast %c16_i32_0 : i32 to vector<16x128xi32>
    %13 = arith.shrui %11, %12 : vector<16x128xi32>
    %14 = arith.xori %11, %13 : vector<16x128xi32>
    %c2146121005_i32 = arith.constant 2146121005 : i32
    %15 = vector.broadcast %c2146121005_i32 : i32 to vector<16x128xi32>
    %16 = arith.muli %14, %15 : vector<16x128xi32>
    %c15_i32 = arith.constant 15 : i32
    %17 = vector.broadcast %c15_i32 : i32 to vector<16x128xi32>
    %18 = arith.shrui %16, %17 : vector<16x128xi32>
    %19 = arith.xori %16, %18 : vector<16x128xi32>
    %c-2073254261_i32 = arith.constant -2073254261 : i32
    %20 = vector.broadcast %c-2073254261_i32 : i32 to vector<16x128xi32>
    %21 = arith.muli %19, %20 : vector<16x128xi32>
    %c16_i32_1 = arith.constant 16 : i32
    %22 = vector.broadcast %c16_i32_1 : i32 to vector<16x128xi32>
    %23 = arith.shrui %21, %22 : vector<16x128xi32>
    %24 = arith.xori %21, %23 : vector<16x128xi32>
    %c8_i32 = arith.constant 8 : i32
    %25 = vector.broadcast %c8_i32 : i32 to vector<16x128xi32>
    %26 = arith.shrui %24, %25 : vector<16x128xi32>
    %27 = arith.sitofp %26 : vector<16x128xi32> to vector<16x128xf32>
    %cst = arith.constant 5.000000e-01 : f32
    %28 = vector.broadcast %cst : f32 to vector<16x128xf32>
    %29 = arith.addf %27, %28 : vector<16x128xf32>
    %cst_2 = arith.constant 5.96046448E-8 : f32
    %30 = vector.broadcast %cst_2 : f32 to vector<16x128xf32>
    %31 = arith.mulf %29, %30 : vector<16x128xf32>
    %cst_3 = arith.constant 2.000000e+00 : f32
    %32 = vector.broadcast %cst_3 : f32 to vector<16x128xf32>
    %33 = arith.mulf %32, %31 : vector<16x128xf32>
    %cst_4 = arith.constant 1.000000e+00 : f32
    %34 = vector.broadcast %cst_4 : f32 to vector<16x128xf32>
    %35 = arith.subf %33, %34 : vector<16x128xf32>
    %36 = arith.mulf %35, %35 : vector<16x128xf32>
    %cst_5 = arith.constant 1.000000e+00 : f32
    %37 = vector.broadcast %cst_5 : f32 to vector<16x128xf32>
    %38 = arith.subf %37, %36 : vector<16x128xf32>
    %39 = math.log %38 : vector<16x128xf32>
    %cst_6 = arith.constant 0.000000e+00 : f32
    %40 = vector.broadcast %cst_6 : f32 to vector<16x128xf32>
    %41 = arith.subf %40, %39 : vector<16x128xf32>
    %cst_7 = arith.constant 2.500000e+00 : f32
    %42 = vector.broadcast %cst_7 : f32 to vector<16x128xf32>
    %43 = arith.subf %41, %42 : vector<16x128xf32>
    %cst_8 = arith.constant 2.81022636E-8 : f32
    %44 = vector.broadcast %cst_8 : f32 to vector<16x128xf32>
    %45 = arith.mulf %44, %43 : vector<16x128xf32>
    %cst_9 = arith.constant 3.43273939E-7 : f32
    %46 = vector.broadcast %cst_9 : f32 to vector<16x128xf32>
    %47 = arith.addf %46, %45 : vector<16x128xf32>
    %48 = arith.mulf %47, %43 : vector<16x128xf32>
    %cst_10 = arith.constant -3.5233877E-6 : f32
    %49 = vector.broadcast %cst_10 : f32 to vector<16x128xf32>
    %50 = arith.addf %49, %48 : vector<16x128xf32>
    %51 = arith.mulf %50, %43 : vector<16x128xf32>
    %cst_11 = arith.constant -4.39150654E-6 : f32
    %52 = vector.broadcast %cst_11 : f32 to vector<16x128xf32>
    %53 = arith.addf %52, %51 : vector<16x128xf32>
    %54 = arith.mulf %53, %43 : vector<16x128xf32>
    %cst_12 = arith.constant 2.1858087E-4 : f32
    %55 = vector.broadcast %cst_12 : f32 to vector<16x128xf32>
    %56 = arith.addf %55, %54 : vector<16x128xf32>
    %57 = arith.mulf %56, %43 : vector<16x128xf32>
    %cst_13 = arith.constant -0.00125372503 : f32
    %58 = vector.broadcast %cst_13 : f32 to vector<16x128xf32>
    %59 = arith.addf %58, %57 : vector<16x128xf32>
    %60 = arith.mulf %59, %43 : vector<16x128xf32>
    %cst_14 = arith.constant -0.00417768164 : f32
    %61 = vector.broadcast %cst_14 : f32 to vector<16x128xf32>
    %62 = arith.addf %61, %60 : vector<16x128xf32>
    %63 = arith.mulf %62, %43 : vector<16x128xf32>
    %cst_15 = arith.constant 0.246640727 : f32
    %64 = vector.broadcast %cst_15 : f32 to vector<16x128xf32>
    %65 = arith.addf %64, %63 : vector<16x128xf32>
    %66 = arith.mulf %65, %43 : vector<16x128xf32>
    %cst_16 = arith.constant 1.50140941 : f32
    %67 = vector.broadcast %cst_16 : f32 to vector<16x128xf32>
    %68 = arith.addf %67, %66 : vector<16x128xf32>
    %69 = math.sqrt %41 : vector<16x128xf32>
    %cst_17 = arith.constant 3.000000e+00 : f32
    %70 = vector.broadcast %cst_17 : f32 to vector<16x128xf32>
    %71 = arith.subf %69, %70 : vector<16x128xf32>
    %cst_18 = arith.constant -2.00214257E-4 : f32
    %72 = vector.broadcast %cst_18 : f32 to vector<16x128xf32>
    %73 = arith.mulf %72, %71 : vector<16x128xf32>
    %cst_19 = arith.constant 1.00950558E-4 : f32
    %74 = vector.broadcast %cst_19 : f32 to vector<16x128xf32>
    %75 = arith.addf %74, %73 : vector<16x128xf32>
    %76 = arith.mulf %75, %71 : vector<16x128xf32>
    %cst_20 = arith.constant 0.00134934322 : f32
    %77 = vector.broadcast %cst_20 : f32 to vector<16x128xf32>
    %78 = arith.addf %77, %76 : vector<16x128xf32>
    %79 = arith.mulf %78, %71 : vector<16x128xf32>
    %cst_21 = arith.constant -0.00367342844 : f32
    %80 = vector.broadcast %cst_21 : f32 to vector<16x128xf32>
    %81 = arith.addf %80, %79 : vector<16x128xf32>
    %82 = arith.mulf %81, %71 : vector<16x128xf32>
    %cst_22 = arith.constant 0.00573950773 : f32
    %83 = vector.broadcast %cst_22 : f32 to vector<16x128xf32>
    %84 = arith.addf %83, %82 : vector<16x128xf32>
    %85 = arith.mulf %84, %71 : vector<16x128xf32>
    %cst_23 = arith.constant -0.0076224613 : f32
    %86 = vector.broadcast %cst_23 : f32 to vector<16x128xf32>
    %87 = arith.addf %86, %85 : vector<16x128xf32>
    %88 = arith.mulf %87, %71 : vector<16x128xf32>
    %cst_24 = arith.constant 0.00943887047 : f32
    %89 = vector.broadcast %cst_24 : f32 to vector<16x128xf32>
    %90 = arith.addf %89, %88 : vector<16x128xf32>
    %91 = arith.mulf %90, %71 : vector<16x128xf32>
    %cst_25 = arith.constant 1.00167406 : f32
    %92 = vector.broadcast %cst_25 : f32 to vector<16x128xf32>
    %93 = arith.addf %92, %91 : vector<16x128xf32>
    %94 = arith.mulf %93, %71 : vector<16x128xf32>
    %cst_26 = arith.constant 2.83297682 : f32
    %95 = vector.broadcast %cst_26 : f32 to vector<16x128xf32>
    %96 = arith.addf %95, %94 : vector<16x128xf32>
    %cst_27 = arith.constant 5.000000e+00 : f32
    %97 = vector.broadcast %cst_27 : f32 to vector<16x128xf32>
    %98 = arith.cmpf olt, %41, %97 : vector<16x128xf32>
    %99 = arith.select %98, %68, %96 : vector<16x128xi1>, vector<16x128xf32>
    %cst_28 = arith.constant 1.41421354 : f32
    %100 = vector.broadcast %cst_28 : f32 to vector<16x128xf32>
    %101 = arith.mulf %100, %99 : vector<16x128xf32>
    %102 = arith.mulf %101, %35 : vector<16x128xf32>
    %c0_29 = arith.constant 0 : index
    %c0_30 = arith.constant 0 : index
    %103 = vector.load %arg2[%c0_29, %c0_30] : memref<16x128xf32, #tpu.memory_space<vmem>>, vector<16x128xf32>
    %cst_31 = arith.constant 1.000000e-01 : f32
    %104 = vector.broadcast %cst_31 : f32 to vector<16x128xf32>
    %105 = arith.mulf %104, %103 : vector<16x128xf32>
    %106 = arith.mulf %105, %102 : vector<16x128xf32>
    %107 = arith.addf %103, %106 : vector<16x128xf32>
    %c0_32 = arith.constant 0 : index
    %c0_33 = arith.constant 0 : index
    %108 = vector.load %arg3[%c0_32, %c0_33] : memref<16x128xf32, #tpu.memory_space<vmem>>, vector<16x128xf32>
    tpu.vector_store %arg3[%c0_32, %c0_33], %107 {strides = array<i32>} : memref<16x128xf32, #tpu.memory_space<vmem>>, vector<16x128xf32>,
    return
  }
  func.func @transform_0(%arg0: i32, %arg1: memref<1xi32, #tpu.memory_space<smem>>) -> (i32, i32) {
    %c0_i32 = arith.constant 0 : i32
    %c0_i32_0 = arith.constant 0 : i32
    return %arg0, %c0_i32 : i32, i32
  }
  func.func @transform_1(%arg0: i32, %arg1: memref<1xi32, #tpu.memory_space<smem>>) -> (i32, i32) {
    %c0_i32 = arith.constant 0 : i32
    %c0_i32_0 = arith.constant 0 : i32
    return %arg0, %c0_i32 : i32, i32
  }
}

</mosaic_0001>

<llo_original>
// kernel: tpu_custom_call.1
$region0: #{tpu_custom_call.1}
  #allocation0 [shape = 'u32[]', space=smem, size = 0x4, offset = 0x4, fixed_abs, tag = 'smem constant byte address 0x4 - core index']
  #allocation1 [shape = 'u32[144,128]{1,0:T(1,128)}', space=vmem, size = 0x12000, scoped, tag = 'internal scratch']
  #allocation2 [shape = 's32[1]{0}', space=sflag, size = 0x4, scoped, tag = 'scoped memory for tpu_custom_call.1']
  #allocation3 [shape = 's32[1]{0:T(128)S(6)}', space=smem, size = 0x200, scoped, tag = 'prefetched SMEM operand 0']
  %s0 = inlined_call_operand.<no memory space> [shape: s32[1], index: 0, kind: input, shape index: {}]
  %s1 = inlined_call_operand.hbm [shape: f32[16,128], index: 1, kind: input, shape index: {}]
  %s2 = inlined_call_operand.hbm [shape: f32[16,128], index: 2, kind: output, shape index: {}]
  %s3 = sld [smem:[#allocation0]]
  $region18: #{tpu_custom_call.1} parent=0
    _
  %s5 = ssub.s32 1, %s3
  %s6 = scalar_select 0, %s5, %s3
  %7 = sst [smem:[#allocation3]] %s0
  $region1: #{tpu_custom_call.1} parent=0
    #allocation4 [shape = 'u8[8192]{0}', space=vmem, size = 0x2000, scoped, tag = 'input window, operand 1, single buffered']
    #allocation5 [shape = 's32[1]{0}', space=sflag, size = 0x4, scoped, tag = 'scoped memory for tpu_custom_call.1']
    #allocation6 [shape = 's32[1]{0}', space=sflag, size = 0x4, scoped, tag = 'scoped memory for tpu_custom_call.1']
    #allocation7 [shape = 'u8[8192]{0}', space=vmem, size = 0x2000, scoped, tag = 'output window, operand 0, single buffered']
    %8 = vsyncpa [#allocation5], 0
    %9 = vsyncpa [#allocation6], 0
    // Predicated region
    $region2: #{tpu_custom_call.1} parent=1 // pred_check
      _
    $region3: #{tpu_custom_call.1} parent=1 // pred_check_branch
      %11 = sbr.rel (0) target = $region5
    $region4: #{tpu_custom_call.1} parent=1 // pred_region
      %s13 = ssub.s32 256, 256
      %14 = vsyncadd [#allocation5], %s13
      %s15 = sshll.u32 [#allocation4], 4
      %s16 = int_to_ptr.vmem [resolvable:$true] %s15
      %21 = dma.hbm_to_vmem [thread:$0]  %s1, 256, %s16, [#allocation5], 128, 128, 8
    $region5: #{tpu_custom_call.1} parent=1 // pred_fallthru
      _
    // Predicated region
    $region6: #{tpu_custom_call.1} parent=1 // pred_check
      _
    $region7: #{tpu_custom_call.1} parent=1 // pred_check_branch
      %23 = sbr.rel (0) target = $region9
    $region8: #{tpu_custom_call.1} parent=1 // pred_region
      %24 = dma.done [#allocation5], 256
    $region9: #{tpu_custom_call.1} parent=1 // pred_fallthru
      _
    %v25 = vlaneseq
    %v26 = vshrl.u32 %v25, 7
    %v27 = vadd.s32 %v26, 8
    %v28 = vlaneseq
    %v29 = vand.u32 %v28, 127
    %s30 = smul.u32 0, 16
    %v31 = vstv %s30
    %v32 = vadd.s32 %v31, %v26
    %v33 = vadd.s32 %v31, %v27
    %v34 = vmul.u32 %v32, 128
    %v35 = vmul.u32 %v33, 128
    %v36 = vadd.s32 %v34, %v29
    %v37 = vadd.s32 %v35, %v29
    %s38 = sld [smem:[#allocation3]]
    %s39 = smul.u32 %s38, 2654435769
    %v40 = vstv %s39
    %v41 = vadd.s32 %v36, %v40
    %v42 = vadd.s32 %v37, %v40
    %v43 = vshrl.u32 %v41, 16
    %v44 = vshrl.u32 %v42, 16
    %v45 = vxor.u32 %v41, %v43
    %v46 = vxor.u32 %v42, %v44
    %v47 = vmul.u32 %v45, 2146121005
    %v48 = vmul.u32 %v46, 2146121005
    %v49 = vshrl.u32 %v47, 15
    %v50 = vshrl.u32 %v48, 15
    %v51 = vxor.u32 %v47, %v49
    %v52 = vxor.u32 %v48, %v50
    %v53 = vmul.u32 %v51, 2221713035
    %v54 = vmul.u32 %v52, 2221713035
    %v55 = vshrl.u32 %v53, 16
    %v56 = vshrl.u32 %v54, 16
    %v57 = vxor.u32 %v53, %v55
    %v58 = vxor.u32 %v54, %v56
    %v59 = vshrl.u32 %v57, 8
    %v60 = vshrl.u32 %v58, 8
    %v61 = vcvt.s32.f32 %v59
    %v62 = vcvt.s32.f32 %v60
    %v63 = vadd.f32 %v61, 0.5
    %v64 = vadd.f32 %v62, 0.5
    %v65 = vmul.f32 %v63, 5.9604645e-08
    %v66 = vmul.f32 %v64, 5.9604645e-08
    %v67 = vmul.f32 %v65, 2.0
    %v68 = vmul.f32 %v66, 2.0
    %v69 = vsub.f32 %v67, 1.0
    %v70 = vsub.f32 %v68, 1.0
    %v71 = vmul.f32 %v69, %v69
    %v72 = vmul.f32 %v70, %v70
    %v73 = vsub.f32 1.0, %v71
    %v74 = vsub.f32 1.0, %v72
    %v75 = vlog2.pop %v73
    %v76 = vmul.f32 %v75, 0.6931472
    %v77 = vlog2.pop %v74
    %v78 = vmul.f32 %v77, 0.6931472
    %v79 = vsub.f32 0.0, %v76
    %v80 = vsub.f32 0.0, %v78
    %v81 = vsub.f32 %v79, 2.5
    %v82 = vsub.f32 %v80, 2.5
    %v83 = vmul.f32 %v81, 2.8102264e-08
    %v84 = vmul.f32 %v82, 2.8102264e-08
    %v85 = vadd.f32 %v83, 3.4327394e-07
    %v86 = vadd.f32 %v84, 3.4327394e-07
    %v87 = vmul.f32 %v85, %v81
    %v88 = vmul.f32 %v86, %v82
    %v89 = vadd.f32 %v87, -3.5233877e-06
    %v90 = vadd.f32 %v88, -3.5233877e-06
    %v91 = vmul.f32 %v89, %v81
    %v92 = vmul.f32 %v90, %v82
    %v93 = vadd.f32 %v91, -4.3915065e-06
    %v94 = vadd.f32 %v92, -4.3915065e-06
    %v95 = vmul.f32 %v93, %v81
    %v96 = vmul.f32 %v94, %v82
    %v97 = vadd.f32 %v95, 0.00021858087
    %v98 = vadd.f32 %v96, 0.00021858087
    %v99 = vmul.f32 %v97, %v81
    %v100 = vmul.f32 %v98, %v82
    %v101 = vadd.f32 %v99, -0.001253725
    %v102 = vadd.f32 %v100, -0.001253725
    %v103 = vmul.f32 %v101, %v81
    %v104 = vmul.f32 %v102, %v82
    %v105 = vadd.f32 %v103, -0.0041776816
    %v106 = vadd.f32 %v104, -0.0041776816
    %v107 = vmul.f32 %v105, %v81
    %v108 = vmul.f32 %v106, %v82
    %v109 = vadd.f32 %v107, 0.24664073
    %v110 = vadd.f32 %v108, 0.24664073
    %v111 = vmul.f32 %v109, %v81
    %v112 = vmul.f32 %v110, %v82
    %v113 = vadd.f32 %v111, 1.5014094
    %v114 = vadd.f32 %v112, 1.5014094
    %v115 = vrsqrt.pop %v79
    %v116 = vmul.f32 %v79, %v115
    %vm117 = vcmp.eq.f32.partialorder %v79, inf
    %v118 = vsel %vm117, %v79, %v116
    %vm119 = vcmp.eq.f32.partialorder %v79, 0.0
    %v120 = vand.u32 %v79, 2147483648
    %v121 = vsel %vm119, %v120, %v118
    %v122 = vrsqrt.pop %v80
    %v123 = vmul.f32 %v80, %v122
    %vm124 = vcmp.eq.f32.partialorder %v80, inf
    %v125 = vsel %vm124, %v80, %v123
    %vm126 = vcmp.eq.f32.partialorder %v80, 0.0
    %v127 = vand.u32 %v80, 2147483648
    %v128 = vsel %vm126, %v127, %v125
    %v129 = vsub.f32 %v121, 3.0
    %v130 = vsub.f32 %v128, 3.0
    %v131 = vmul.f32 %v129, -0.00020021426
    %v132 = vmul.f32 %v130, -0.00020021426
    %v133 = vadd.f32 %v131, 0.00010095056
    %v134 = vadd.f32 %v132, 0.00010095056
    %v135 = vmul.f32 %v133, %v129
    %v136 = vmul.f32 %v134, %v130
    %v137 = vadd.f32 %v135, 0.0013493432
    %v138 = vadd.f32 %v136, 0.0013493432
    %v139 = vmul.f32 %v137, %v129
    %v140 = vmul.f32 %v138, %v130
    %v141 = vadd.f32 %v139, -0.0036734284
    %v142 = vadd.f32 %v140, -0.0036734284
    %v143 = vmul.f32 %v141, %v129
    %v144 = vmul.f32 %v142, %v130
    %v145 = vadd.f32 %v143, 0.0057395077
    %v146 = vadd.f32 %v144, 0.0057395077
    %v147 = vmul.f32 %v145, %v129
    %v148 = vmul.f32 %v146, %v130
    %v149 = vadd.f32 %v147, -0.0076224613
    %v150 = vadd.f32 %v148, -0.0076224613
    %v151 = vmul.f32 %v149, %v129
    %v152 = vmul.f32 %v150, %v130
    %v153 = vadd.f32 %v151, 0.0094388705
    %v154 = vadd.f32 %v152, 0.0094388705
    %v155 = vmul.f32 %v153, %v129
    %v156 = vmul.f32 %v154, %v130
    %v157 = vadd.f32 %v155, 1.001674
    %v158 = vadd.f32 %v156, 1.001674
    %v159 = vmul.f32 %v157, %v129
    %v160 = vmul.f32 %v158, %v130
    %v161 = vadd.f32 %v159, 2.8329768
    %v162 = vadd.f32 %v160, 2.8329768
    %vm163 = vcmp.lt.f32.partialorder %v79, 5.0
    %vm164 = vcmp.lt.f32.partialorder %v80, 5.0
    %v165 = vsel %vm163, %v113, %v161
    %v166 = vsel %vm164, %v114, %v162
    %v167 = vmul.f32 %v165, 1.4142135
    %v168 = vmul.f32 %v166, 1.4142135
    %v169 = vmul.f32 %v167, %v69
    %v170 = vmul.f32 %v168, %v70
    %v171 = vld [vmem:[#allocation4] sm:$0xff]
    %v172 = vld [vmem:[#allocation4 + $0x8] sm:$0xff]
    %v173 = vmul.f32 %v171, 0.1
    %v174 = vmul.f32 %v172, 0.1
    %v175 = vmul.f32 %v173, %v169
    %v176 = vmul.f32 %v174, %v170
    %v177 = vadd.f32 %v171, %v175
    %v178 = vadd.f32 %v172, %v176
    %179 = vst [vmem:[#allocation7] sm:$0xff] %v177
    %180 = vst [vmem:[#allocation7 + $0x8] sm:$0xff] %v178
    // Predicated region
    $region10: #{tpu_custom_call.1} parent=1 // pred_check
      _
    $region11: #{tpu_custom_call.1} parent=1 // pred_check_branch
      %182 = sbr.rel (0) target = $region13
    $region12: #{tpu_custom_call.1} parent=1 // pred_region
      %s184 = ssub.s32 256, 256
      %185 = vsyncadd [#allocation6], %s184
      %s186 = sshll.u32 [#allocation7], 4
      %s187 = int_to_ptr.vmem [resolvable:$true] %s186
      %192 = dma.vmem_to_hbm [thread:$0]  %s187, 256, %s2, [#allocation6], 128, 128, 8
    $region13: #{tpu_custom_call.1} parent=1 // pred_fallthru
      _
    // Predicated region
    $region14: #{tpu_custom_call.1} parent=1 // pred_check
      _
    $region15: #{tpu_custom_call.1} parent=1 // pred_check_branch
      %194 = sbr.rel (0) target = $region17
    $region16: #{tpu_custom_call.1} parent=1 // pred_region
      %195 = dma.done [#allocation6], 256
    $region17: #{tpu_custom_call.1} parent=1 // pred_fallthru
      _
    %196 = vsyncpa [#allocation5], 1
    %197 = vsyncpa [#allocation6], 1

</llo_original>
